<compile_context>
chip_gen: v6e
topology: v6e:2x2x1
jax: 0.10.0
libtpu: 0.0.40
codegen_flags: <defaults>
</compile_context>

<pallas_src>
import functools

import jax
import jax.numpy as jnp
from jax.experimental import pallas as pl
from jax.experimental.pallas import tpu as pltpu


def _sparse_ce_kernel(logits_ref, labels_ref, loss_ref, *, n_rows, row_tile):
    i = pl.program_id(0)

    x = logits_ref[...].astype(jnp.float32)          # (rt, C)
    lab = labels_ref[...]                            # (rt, 1) int32
    rt, c = x.shape

    # Numerically stable log-sum-exp over the class (lane) axis.
    row_max = jnp.max(x, axis=-1, keepdims=True)     # (rt, 1)
    ex = jnp.exp(x - row_max)
    lse = row_max + jnp.log(jnp.sum(ex, axis=-1, keepdims=True))

    # Gather the target logit via an iota compare (sparse labels, no one-hot).
    col_ids = jax.lax.broadcasted_iota(jnp.int32, (rt, c), 1)
    tgt = jnp.sum(jnp.where(col_ids == lab, x, 0.0), axis=-1, keepdims=True)

    loss = lse - tgt                                 # (rt, 1) per-row NLL

    # Mask tail rows past n_rows (the last tile may overhang the array).
    row_ids = i * row_tile + jax.lax.broadcasted_iota(jnp.int32, (rt, 1), 0)
    loss = jnp.where(row_ids < n_rows, loss, 0.0)

    loss_ref[...] = loss


def _choose_row_tile(n_rows, n_cols, itemsize, target_bytes=2 << 20, max_rows=2048):
    """Row tile targeting ~target_bytes per logits block (sublane-aligned)."""
    rt = target_bytes // max(1, n_cols * itemsize)
    rt = int(max(8, min(max_rows, rt))) // 8 * 8
    if rt >= n_rows:
        return n_rows                                # single block == full rows
    return rt


def sparse_ce(logits, labels, *, reduction="sum", row_tile=None):
    """Pallas SparseCE. logits: (B, C) or (B, T, C); labels: (B,) / (B, T) int."""
    orig_shape = logits.shape
    if logits.ndim == 3:
        b, t, c = logits.shape
        logits2d = logits.reshape(b * t, c)
        labels1d = labels.reshape(b * t)
    elif logits.ndim == 2:
        logits2d = logits
        labels1d = labels
    else:
        raise Exception("not defined")

    n, c = logits2d.shape
    labels2d = labels1d.astype(jnp.int32).reshape(n, 1)

    if row_tile is None:
        rt = _choose_row_tile(n, c, logits2d.dtype.itemsize)
    else:
        rt = min(int(row_tile), n)
        if rt < n:
            rt = max(8, (rt // 8) * 8)
    grid = (pl.cdiv(n, rt),)

    # Explicit VMEM budget: logits block + labels + per-row loss, double
    # buffered, plus slack. Stays well under v7x's 64 MiB with default tiles.
    block_bytes = rt * c * logits2d.dtype.itemsize + 2 * rt * 4
    vmem_limit = int(max(32 << 20, 4 * block_bytes + (4 << 20)))

    kernel = functools.partial(_sparse_ce_kernel, n_rows=n, row_tile=rt)

    per_row = pl.pallas_call(
        kernel,
        out_shape=jax.ShapeDtypeStruct((n, 1), jnp.float32),
        grid_spec=pltpu.PrefetchScalarGridSpec(
            num_scalar_prefetch=0,
            grid=grid,
            in_specs=[
                pl.BlockSpec((rt, c), lambda i: (i, 0)),   # logits (native dtype)
                pl.BlockSpec((rt, 1), lambda i: (i, 0)),   # int32 labels column
            ],
            out_specs=pl.BlockSpec((rt, 1), lambda i: (i, 0)),
        ),
        compiler_params=pltpu.CompilerParams(
            dimension_semantics=("parallel",),             # per-tile outputs -> no serial dep
            vmem_limit_bytes=vmem_limit,
        ),
    )(logits2d, labels2d)

    per_row = per_row[:, 0]
    if reduction == "sum":
        return jnp.sum(per_row)
    if reduction == "mean":
        return jnp.sum(per_row) / jnp.float32(n)
    if reduction == "none":
        if len(orig_shape) == 3:
            return per_row.reshape(orig_shape[0], orig_shape[1])
        return per_row
    raise ValueError(f"unknown reduction: {reduction}")
    # TODO(synk): nn.CrossEntropyLoss extras (ignore_index, class weights,
    # label smoothing) passed via *args/**kargs are not implemented here.


def _sparse_ce_ref(logits, labels, reduction="sum"):
    if logits.ndim == 3:
        b, t, _ = logits.shape
        flat_logits = logits.reshape(b * t, logits.shape[-1])
        flat_labels = labels.reshape(b * t)
        none_shape = (b, t)
    else:
        flat_logits, flat_labels = logits, labels
        none_shape = (logits.shape[0],)
    logp = jax.nn.log_softmax(flat_logits.astype(jnp.float32), axis=-1)
    nll = -jnp.take_along_axis(logp, flat_labels.astype(jnp.int32)[:, None], axis=-1)[:, 0]
    if reduction == "sum":
        return jnp.sum(nll)
    if reduction == "mean":
        return jnp.mean(nll)
    return nll.reshape(none_shape)


if __name__ == "__main__":
    key = jax.random.PRNGKey(0)
    k1, k2, k3, k4 = jax.random.split(key, 4)

    # 3-D case (B, T, C) with integer labels (B, T) -- exercises the
    # transpose(1,2) path of the PyTorch module (CE over the class axis).
    B, T, C = 2, 8, 32
    logits3 = jax.random.normal(k1, (B, T, C), dtype=jnp.float32)
    labels3 = jax.random.randint(k2, (B, T), 0, C)

    out3 = jax.block_until_ready(sparse_ce(logits3, labels3, reduction="sum"))
    ref3 = _sparse_ce_ref(logits3, labels3, reduction="sum")
    assert jnp.allclose(out3, ref3, rtol=1e-5, atol=1e-5), (out3, ref3)

    # 2-D case (B, C) with labels (B,).
    B2, C2 = 16, 128
    logits2 = jax.random.normal(k3, (B2, C2), dtype=jnp.float32)
    labels2 = jax.random.randint(k4, (B2,), 0, C2)

    out2 = jax.block_until_ready(sparse_ce(logits2, labels2, reduction="sum"))
    ref2 = _sparse_ce_ref(logits2, labels2, reduction="sum")
    assert jnp.allclose(out2, ref2, rtol=1e-5, atol=1e-5), (out2, ref2)

    print("KERNEL_OK")
</pallas_src>

<mosaic_0001>
module attributes {stable_mosaic.version = 11 : i64} {
  func.func @_sparse_ce_kernel(%arg0: i32, %arg1: memref<16x32xf32, #tpu.memory_space<vmem>>, %arg2: memref<16x1xi32, #tpu.memory_space<vmem>>, %arg3: memref<16x1xf32, #tpu.memory_space<vmem>>) attributes {dimension_semantics = [#tpu.dimension_semantics<parallel>], iteration_bounds = array<i64: 1>, scalar_prefetch = 0 : i64, scratch_operands = 0 : i64, tpu.core_type = #tpu.core_type<tc>, window_params = [{transform_indices = @transform_0, window_bounds = array<i64: 16, 32>}, {transform_indices = @transform_1, window_bounds = array<i64: 16, 1>}, {transform_indices = @transform_2, window_bounds = array<i64: 16, 1>}]} {
    %c0 = arith.constant 0 : index
    %c0_0 = arith.constant 0 : index
    %0 = vector.load %arg1[%c0, %c0_0] : memref<16x32xf32, #tpu.memory_space<vmem>>, vector<16x32xf32>
    %c0_1 = arith.constant 0 : index
    %c0_2 = arith.constant 0 : index
    %1 = vector.load %arg2[%c0_1, %c0_2] : memref<16x1xi32, #tpu.memory_space<vmem>>, vector<16x1xi32>
    %cst = arith.constant dense<0xFF800000> : vector<16xf32>
    %2 = vector.multi_reduction <maximumf>, %0, %cst [1] : vector<16x32xf32> to vector<16xf32>
    %3 = vector.shape_cast %2 : vector<16xf32> to vector<16x1xf32>
    %4 = vector.broadcast %3 : vector<16x1xf32> to vector<16x32xf32>
    %5 = arith.subf %0, %4 : vector<16x32xf32>
    %6 = math.exp %5 : vector<16x32xf32>
    %cst_3 = arith.constant dense<0.000000e+00> : vector<16xf32>
    %7 = vector.multi_reduction <add>, %6, %cst_3 [1] : vector<16x32xf32> to vector<16xf32>
    %8 = vector.shape_cast %7 : vector<16xf32> to vector<16x1xf32>
    %9 = math.log %8 : vector<16x1xf32>
    %10 = arith.addf %3, %9 : vector<16x1xf32>
    %11 = tpu.iota {dimensions = array<i32: 1>} : vector<16x32xi32>
    %12 = vector.broadcast %1 : vector<16x1xi32> to vector<16x32xi32>
    %13 = arith.cmpi eq, %11, %12 : vector<16x32xi32>
    %cst_4 = arith.constant 0.000000e+00 : f32
    %14 = vector.broadcast %cst_4 : f32 to vector<16x32xf32>
    %15 = arith.select %13, %0, %14 : vector<16x32xi1>, vector<16x32xf32>
    %cst_5 = arith.constant dense<0.000000e+00> : vector<16xf32>
    %16 = vector.multi_reduction <add>, %15, %cst_5 [1] : vector<16x32xf32> to vector<16xf32>
    %17 = vector.shape_cast %16 : vector<16xf32> to vector<16x1xf32>
    %18 = arith.subf %10, %17 : vector<16x1xf32>
    %c16_i32 = arith.constant 16 : i32
    %19 = arith.muli %arg0, %c16_i32 : i32
    %20 = tpu.iota {dimensions = array<i32: 0>} : vector<16x1xi32>
    %21 = vector.broadcast %19 : i32 to vector<16x1xi32>
    %22 = arith.addi %21, %20 : vector<16x1xi32>
    %c16_i32_6 = arith.constant 16 : i32
    %23 = vector.broadcast %c16_i32_6 : i32 to vector<16x1xi32>
    %24 = arith.cmpi slt, %22, %23 : vector<16x1xi32>
    %cst_7 = arith.constant 0.000000e+00 : f32
    %25 = vector.broadcast %cst_7 : f32 to vector<16x1xf32>
    %26 = arith.select %24, %18, %25 : vector<16x1xi1>, vector<16x1xf32>
    %c0_8 = arith.constant 0 : index
    %c0_9 = arith.constant 0 : index
    %27 = vector.load %arg3[%c0_8, %c0_9] : memref<16x1xf32, #tpu.memory_space<vmem>>, vector<16x1xf32>
    tpu.vector_store %arg3[%c0_8, %c0_9], %26 {strides = array<i32>} : memref<16x1xf32, #tpu.memory_space<vmem>>, vector<16x1xf32>,
    return
  }
  func.func @transform_0(%arg0: i32) -> (i32, i32) {
    %c0_i32 = arith.constant 0 : i32
    %c0_i32_0 = arith.constant 0 : i32
    return %arg0, %c0_i32 : i32, i32
  }
  func.func @transform_1(%arg0: i32) -> (i32, i32) {
    %c0_i32 = arith.constant 0 : i32
    %c0_i32_0 = arith.constant 0 : i32
    return %arg0, %c0_i32 : i32, i32
  }
  func.func @transform_2(%arg0: i32) -> (i32, i32) {
    %c0_i32 = arith.constant 0 : i32
    %c0_i32_0 = arith.constant 0 : i32
    return %arg0, %c0_i32 : i32, i32
  }
}

</mosaic_0001>

<llo_original>
// kernel: tpu_custom_call.1
$region0: #{tpu_custom_call.1}
  #allocation0 [shape = 'u32[]', space=smem, size = 0x4, offset = 0x4, fixed_abs, tag = 'smem constant byte address 0x4 - core index']
  #allocation1 [shape = 'u32[144,128]{1,0:T(1,128)}', space=vmem, size = 0x12000, scoped, tag = 'internal scratch']
  %s0 = inlined_call_operand.vmem [shape: f32[16,32], index: 0, kind: input, shape index: {}]
  %s1 = inlined_call_operand.vmem [shape: s32[16,1], index: 1, kind: input, shape index: {}]
  %s2 = inlined_call_operand.vmem [shape: f32[16,1], index: 2, kind: output, shape index: {}]
  %s3 = sld [smem:[#allocation0]]
  $region18: #{tpu_custom_call.1} parent=0
    _
  %s5 = ssub.s32 1, %s3
  %s6 = scalar_select 0, %s5, %s3
  // Predicated region
  $region2: #{tpu_custom_call.1} parent=0 // pred_check
    _
  $region3: #{tpu_custom_call.1} parent=0 // pred_check_branch
    %8 = sbr.rel (0) target = $region5
  $region4: #{tpu_custom_call.1} parent=0 // pred_region
    _
  $region5: #{tpu_custom_call.1} parent=0 // pred_fallthru
    _
  // Predicated region
  $region6: #{tpu_custom_call.1} parent=0 // pred_check
    _
  $region7: #{tpu_custom_call.1} parent=0 // pred_check_branch
    %10 = sbr.rel (0) target = $region9
  $region8: #{tpu_custom_call.1} parent=0 // pred_region
    _
  $region9: #{tpu_custom_call.1} parent=0 // pred_fallthru
    _
  %v11 = vld [vmem:[%s0] sm:$0xff]
  %v12 = vld [vmem:[%s0 + $0x8] sm:$0xff]
  %v13 = vld [vmem:[%s1] sm:$0xff]
  %v14 = vld [vmem:[%s1 + $0x8] sm:$0xff]
  %vm15 = vcmask 261120
  %v16 = vsel %vm15, %v11, -inf
  %17 = vmax.xlane.f32.xlu0 %v16
  %v18 = vpop.xlane.xlu0 %17
  %v19 = vsel %vm15, %v12, -inf
  %20 = vmax.xlane.f32.xlu0 %v19
  %v21 = vpop.xlane.xlu0 %20
  %v22 = vsub.f32 %v11, %v18
  %v23 = vsub.f32 %v12, %v21
  %v24 = vmul.f32 %v22, 1.442695
  %v25 = vpow.pop %v24
  %v26 = vmul.f32 %v23, 1.442695
  %v27 = vpow.pop %v26
  %v28 = vsel %vm15, %v25, 0.0
  %29 = vadd.xlane.f32.xlu0 %v28
  %v30 = vpop.xlane.xlu0 %29
  %v31 = vsel %vm15, %v27, 0.0
  %32 = vadd.xlane.f32.xlu0 %v31
  %v33 = vpop.xlane.xlu0 %32
  %v34 = vlog2.pop %v30
  %v35 = vmul.f32 %v34, 0.6931472
  %v36 = vlog2.pop %v33
  %v37 = vmul.f32 %v36, 0.6931472
  %v38 = vadd.f32 %v18, %v35
  %v39 = vadd.f32 %v21, %v37
  %v40 = vlaneseq
  %v41 = vand.u32 %v40, 127
  %42 = vset.pattern.permute.xlu0 0
  %43 = vperm.xlu0 %42, %v13
  %v44 = vpop.permute.xlu0 %43
  %45 = vset.pattern.permute.xlu0 0
  %46 = vperm.xlu0 %45, %v14
  %v47 = vpop.permute.xlu0 %46
  %vm48 = vcmp.eq.s32.totalorder %v41, %v44
  %vm49 = vcmp.eq.s32.totalorder %v41, %v47
  %v50 = vsel %vm48, %v11, 0.0
  %v51 = vsel %vm49, %v12, 0.0
  %v52 = vsel %vm15, %v50, 0.0
  %53 = vadd.xlane.f32.xlu0 %v52
  %v54 = vpop.xlane.xlu0 %53
  %v55 = vsel %vm15, %v51, 0.0
  %56 = vadd.xlane.f32.xlu0 %v55
  %v57 = vpop.xlane.xlu0 %56
  %v58 = vsub.f32 %v38, %v54
  %v59 = vsub.f32 %v39, %v57
  %s60 = smul.u32 0, 16
  %v61 = vlaneseq
  %v62 = vshrl.u32 %v61, 7
  %v63 = vadd.s32 %v62, 8
  %v64 = vstv %s60
  %v65 = vadd.s32 %v64, %v62
  %v66 = vadd.s32 %v64, %v63
  %vm67 = vcmp.lt.s32.totalorder %v65, 16
  %vm68 = vcmp.lt.s32.totalorder %v66, 16
  %v69 = vsel %vm67, %v58, 0.0
  %v70 = vsel %vm68, %v59, 0.0
  %vm71 = vcmask 7168
  %72 = vst.msk [vmem:[%s2] sm:$0xff] %vm71, %v69
  %73 = vst.msk [vmem:[%s2 + $0x8] sm:$0xff] %vm71, %v70
  // Predicated region
  $region10: #{tpu_custom_call.1} parent=0 // pred_check
    _
  $region11: #{tpu_custom_call.1} parent=0 // pred_check_branch
    %75 = sbr.rel (0) target = $region13
  $region12: #{tpu_custom_call.1} parent=0 // pred_region
    _
  $region13: #{tpu_custom_call.1} parent=0 // pred_fallthru
    _
  // Predicated region
  $region14: #{tpu_custom_call.1} parent=0 // pred_check
    _
  $region15: #{tpu_custom_call.1} parent=0 // pred_check_branch
    %77 = sbr.rel (0) target = $region17
  $region16: #{tpu_custom_call.1} parent=0 // pred_region
    _
  $region17: #{tpu_custom_call.1} parent=0 // pred_fallthru
    _

</llo_original>
